<compile_context>
chip_gen: v7x
topology: tpu7x:2x2x1
jax: 0.10.0
libtpu: 0.0.40
codegen_flags: <defaults>
</compile_context>

<pallas_src>
import jax
import jax.numpy as jnp
from jax.experimental import pallas as pl
from jax.experimental.pallas import tpu as pltpu

HIDDEN = 8  # width of the folded hidden layer (output of Linear(16, 8))


def _round_up(n, m):
    return ((n + m - 1) // m) * m


def dense_net_kernel(w12h_ref, b12h_ref, w3h_ref, b3h_ref, x_ref, o_ref):
    """x_ref / o_ref: [block_rows, 128] lane-dense f32 batch tile.

    Scalar-prefetch refs (SMEM): w12h [8], b12h [8], w3h [8], b3h [1]
    (sigmoid already folded into these scalars as a tanh in the wrapper).
    """
    x = x_ref[...]                                         # [TR, 128]
    acc = jnp.full_like(x, b3h_ref[0])                     # start from folded bias
    # Static unroll over the 8 hidden features: FMA -> tanh (EUP) -> FMA.
    for f in range(HIDDEN):
        acc = acc + w3h_ref[f] * jnp.tanh(x * w12h_ref[f] + b12h_ref[f])
    o_ref[...] = acc


def dense_net_forward(x, params, *, block_rows=1024):
    """x: [N, 1] float32. Returns [N, 1] float32 matching the torch module."""
    w1, b1, w2, b2, w3, b3 = params                        # torch layouts: [out, in] / [out]

    # Fold Linear(1,16) and Linear(16,8) (exact algebra, done once on 25 scalars).
    w12 = (w2 @ w1)[:, 0]                                  # [8]
    b12 = w2 @ b1 + b2                                     # [8]
    w3v = w3[0]                                            # [8]
    # Fold sigmoid(h) = (1 + tanh(h/2)) / 2 into the scalars.
    w12h = 0.5 * w12                                       # [8]
    b12h = 0.5 * b12                                       # [8]
    w3h = 0.5 * w3v                                        # [8]
    b3h = b3 + 0.5 * jnp.sum(w3v)                          # [1]

    N = x.shape[0]
    rows = pl.cdiv(N, 128)                                 # 128 samples per lane-row
    rows_p = _round_up(rows, 8)                            # keep last block (8,128)-aligned

    # Tile-size policy (see header): multiple of 8, <= 2048 rows (v5e VMEM-safe),
    # and small enough that the parallel grid has >= ~4 steps (v7x 2-TC split).
    block_rows = max(8, _round_up(min(block_rows, 2048), 8))
    block_rows = min(block_rows, max(8, _round_up(pl.cdiv(rows_p, 4), 8)))
    grid = (pl.cdiv(rows_p, block_rows),)                  # Pallas masks the ragged last block

    # NOTE: this pad/reshape is a separate XLA copy; for large N produce x in
    # the [rows, 128] lane-major layout upstream and pass it straight through.
    x2d = jnp.pad(x.reshape(-1), (0, rows_p * 128 - N)).reshape(rows_p, 128)

    out2d = pl.pallas_call(
        dense_net_kernel,
        out_shape=jax.ShapeDtypeStruct((rows_p, 128), jnp.float32),
        grid_spec=pltpu.PrefetchScalarGridSpec(
            num_scalar_prefetch=4,                         # w12h, b12h, w3h, b3h -> SMEM
            grid=grid,
            in_specs=[pl.BlockSpec((block_rows, 128), lambda i, *_: (i, 0))],
            out_specs=pl.BlockSpec((block_rows, 128), lambda i, *_: (i, 0)),
        ),
        compiler_params=pltpu.CompilerParams(
            dimension_semantics=("parallel",),
            vmem_limit_bytes=16 * 1024 * 1024,             # explicit, v5e-safe
        ),
    )(w12h, b12h, w3h, b3h, x2d)

    return out2d.reshape(-1)[:N].reshape(N, 1)


def init_params(key):
    """Matches DenseNET.init_weight_nn: weights ~ N(0,1), biases = 0 (torch layout)."""
    k1, k2, k3 = jax.random.split(key, 3)
    w1 = jax.random.normal(k1, (16, 1), jnp.float32)       # Linear(1, 16).weight
    w2 = jax.random.normal(k2, (8, 16), jnp.float32)       # Linear(16, 8).weight
    w3 = jax.random.normal(k3, (1, 8), jnp.float32)        # Linear(8, 1).weight
    b1 = jnp.zeros((16,), jnp.float32)
    b2 = jnp.zeros((8,), jnp.float32)
    b3 = jnp.zeros((1,), jnp.float32)
    return (w1, b1, w2, b2, w3, b3)


def reference_forward(x, params):
    """Plain-JAX reference reproducing the (unfused) PyTorch Sequential."""
    w1, b1, w2, b2, w3, b3 = params
    h1 = x @ w1.T + b1
    h2 = h1 @ w2.T + b2
    h2 = jax.nn.sigmoid(h2)
    return h2 @ w3.T + b3


if __name__ == "__main__":
    key = jax.random.PRNGKey(0)
    kx, kp = jax.random.split(key)

    N = 2500                                               # input_size = 1 -> x is [N, 1]
    x = jax.random.normal(kx, (N, 1), jnp.float32)
    params = init_params(kp)

    # Production defaults: block_rows=1024 requested, auto-clamped to 8 rows/step
    # for this small N -> grid of 3 parallel steps (exercises tiling + padding).
    out = dense_net_forward(x, params)
    out = jax.block_until_ready(out)

    ref = reference_forward(x, params)
    assert out.shape == (N, 1)
    assert jnp.allclose(out, ref, atol=1e-5, rtol=1e-5), float(jnp.max(jnp.abs(out - ref)))

    print("KERNEL_OK")
</pallas_src>

<mosaic_0001>
module attributes {stable_mosaic.version = 11 : i64} {
  func.func @dense_net_kernel(%arg0: i32, %arg1: memref<8xf32, #tpu.memory_space<smem>>, %arg2: memref<8xf32, #tpu.memory_space<smem>>, %arg3: memref<8xf32, #tpu.memory_space<smem>>, %arg4: memref<1xf32, #tpu.memory_space<smem>>, %arg5: memref<8x128xf32, #tpu.memory_space<vmem>>, %arg6: memref<8x128xf32, #tpu.memory_space<vmem>>) attributes {dimension_semantics = [#tpu.dimension_semantics<parallel>], iteration_bounds = array<i64: 3>, scalar_prefetch = 4 : i64, scratch_operands = 0 : i64, tpu.core_type = #tpu.core_type<tc>, window_params = [{transform_indices = @transform_0, window_bounds = array<i64: 8, 128>}, {transform_indices = @transform_1, window_bounds = array<i64: 8, 128>}]} {
    %c0 = arith.constant 0 : index
    %c0_0 = arith.constant 0 : index
    %0 = vector.load %arg5[%c0, %c0_0] : memref<8x128xf32, #tpu.memory_space<vmem>>, vector<8x128xf32>
    %c0_1 = arith.constant 0 : index
    %1 = memref.load %arg4[%c0_1] : memref<1xf32, #tpu.memory_space<smem>>
    %2 = vector.broadcast %1 : f32 to vector<8x128xf32>
    %c0_2 = arith.constant 0 : index
    %3 = memref.load %arg3[%c0_2] : memref<8xf32, #tpu.memory_space<smem>>
    %c0_3 = arith.constant 0 : index
    %4 = memref.load %arg1[%c0_3] : memref<8xf32, #tpu.memory_space<smem>>
    %5 = vector.broadcast %4 : f32 to vector<8x128xf32>
    %6 = arith.mulf %0, %5 : vector<8x128xf32>
    %c0_4 = arith.constant 0 : index
    %7 = memref.load %arg2[%c0_4] : memref<8xf32, #tpu.memory_space<smem>>
    %8 = vector.broadcast %7 : f32 to vector<8x128xf32>
    %9 = arith.addf %6, %8 : vector<8x128xf32>
    %10 = math.tanh %9 : vector<8x128xf32>
    %11 = vector.broadcast %3 : f32 to vector<8x128xf32>
    %12 = arith.mulf %11, %10 : vector<8x128xf32>
    %13 = arith.addf %2, %12 : vector<8x128xf32>
    %c1 = arith.constant 1 : index
    %14 = memref.load %arg3[%c1] : memref<8xf32, #tpu.memory_space<smem>>
    %c1_5 = arith.constant 1 : index
    %15 = memref.load %arg1[%c1_5] : memref<8xf32, #tpu.memory_space<smem>>
    %16 = vector.broadcast %15 : f32 to vector<8x128xf32>
    %17 = arith.mulf %0, %16 : vector<8x128xf32>
    %c1_6 = arith.constant 1 : index
    %18 = memref.load %arg2[%c1_6] : memref<8xf32, #tpu.memory_space<smem>>
    %19 = vector.broadcast %18 : f32 to vector<8x128xf32>
    %20 = arith.addf %17, %19 : vector<8x128xf32>
    %21 = math.tanh %20 : vector<8x128xf32>
    %22 = vector.broadcast %14 : f32 to vector<8x128xf32>
    %23 = arith.mulf %22, %21 : vector<8x128xf32>
    %24 = arith.addf %13, %23 : vector<8x128xf32>
    %c2 = arith.constant 2 : index
    %25 = memref.load %arg3[%c2] : memref<8xf32, #tpu.memory_space<smem>>
    %c2_7 = arith.constant 2 : index
    %26 = memref.load %arg1[%c2_7] : memref<8xf32, #tpu.memory_space<smem>>
    %27 = vector.broadcast %26 : f32 to vector<8x128xf32>
    %28 = arith.mulf %0, %27 : vector<8x128xf32>
    %c2_8 = arith.constant 2 : index
    %29 = memref.load %arg2[%c2_8] : memref<8xf32, #tpu.memory_space<smem>>
    %30 = vector.broadcast %29 : f32 to vector<8x128xf32>
    %31 = arith.addf %28, %30 : vector<8x128xf32>
    %32 = math.tanh %31 : vector<8x128xf32>
    %33 = vector.broadcast %25 : f32 to vector<8x128xf32>
    %34 = arith.mulf %33, %32 : vector<8x128xf32>
    %35 = arith.addf %24, %34 : vector<8x128xf32>
    %c3 = arith.constant 3 : index
    %36 = memref.load %arg3[%c3] : memref<8xf32, #tpu.memory_space<smem>>
    %c3_9 = arith.constant 3 : index
    %37 = memref.load %arg1[%c3_9] : memref<8xf32, #tpu.memory_space<smem>>
    %38 = vector.broadcast %37 : f32 to vector<8x128xf32>
    %39 = arith.mulf %0, %38 : vector<8x128xf32>
    %c3_10 = arith.constant 3 : index
    %40 = memref.load %arg2[%c3_10] : memref<8xf32, #tpu.memory_space<smem>>
    %41 = vector.broadcast %40 : f32 to vector<8x128xf32>
    %42 = arith.addf %39, %41 : vector<8x128xf32>
    %43 = math.tanh %42 : vector<8x128xf32>
    %44 = vector.broadcast %36 : f32 to vector<8x128xf32>
    %45 = arith.mulf %44, %43 : vector<8x128xf32>
    %46 = arith.addf %35, %45 : vector<8x128xf32>
    %c4 = arith.constant 4 : index
    %47 = memref.load %arg3[%c4] : memref<8xf32, #tpu.memory_space<smem>>
    %c4_11 = arith.constant 4 : index
    %48 = memref.load %arg1[%c4_11] : memref<8xf32, #tpu.memory_space<smem>>
    %49 = vector.broadcast %48 : f32 to vector<8x128xf32>
    %50 = arith.mulf %0, %49 : vector<8x128xf32>
    %c4_12 = arith.constant 4 : index
    %51 = memref.load %arg2[%c4_12] : memref<8xf32, #tpu.memory_space<smem>>
    %52 = vector.broadcast %51 : f32 to vector<8x128xf32>
    %53 = arith.addf %50, %52 : vector<8x128xf32>
    %54 = math.tanh %53 : vector<8x128xf32>
    %55 = vector.broadcast %47 : f32 to vector<8x128xf32>
    %56 = arith.mulf %55, %54 : vector<8x128xf32>
    %57 = arith.addf %46, %56 : vector<8x128xf32>
    %c5 = arith.constant 5 : index
    %58 = memref.load %arg3[%c5] : memref<8xf32, #tpu.memory_space<smem>>
    %c5_13 = arith.constant 5 : index
    %59 = memref.load %arg1[%c5_13] : memref<8xf32, #tpu.memory_space<smem>>
    %60 = vector.broadcast %59 : f32 to vector<8x128xf32>
    %61 = arith.mulf %0, %60 : vector<8x128xf32>
    %c5_14 = arith.constant 5 : index
    %62 = memref.load %arg2[%c5_14] : memref<8xf32, #tpu.memory_space<smem>>
    %63 = vector.broadcast %62 : f32 to vector<8x128xf32>
    %64 = arith.addf %61, %63 : vector<8x128xf32>
    %65 = math.tanh %64 : vector<8x128xf32>
    %66 = vector.broadcast %58 : f32 to vector<8x128xf32>
    %67 = arith.mulf %66, %65 : vector<8x128xf32>
    %68 = arith.addf %57, %67 : vector<8x128xf32>
    %c6 = arith.constant 6 : index
    %69 = memref.load %arg3[%c6] : memref<8xf32, #tpu.memory_space<smem>>
    %c6_15 = arith.constant 6 : index
    %70 = memref.load %arg1[%c6_15] : memref<8xf32, #tpu.memory_space<smem>>
    %71 = vector.broadcast %70 : f32 to vector<8x128xf32>
    %72 = arith.mulf %0, %71 : vector<8x128xf32>
    %c6_16 = arith.constant 6 : index
    %73 = memref.load %arg2[%c6_16] : memref<8xf32, #tpu.memory_space<smem>>
    %74 = vector.broadcast %73 : f32 to vector<8x128xf32>
    %75 = arith.addf %72, %74 : vector<8x128xf32>
    %76 = math.tanh %75 : vector<8x128xf32>
    %77 = vector.broadcast %69 : f32 to vector<8x128xf32>
    %78 = arith.mulf %77, %76 : vector<8x128xf32>
    %79 = arith.addf %68, %78 : vector<8x128xf32>
    %c7 = arith.constant 7 : index
    %80 = memref.load %arg3[%c7] : memref<8xf32, #tpu.memory_space<smem>>
    %c7_17 = arith.constant 7 : index
    %81 = memref.load %arg1[%c7_17] : memref<8xf32, #tpu.memory_space<smem>>
    %82 = vector.broadcast %81 : f32 to vector<8x128xf32>
    %83 = arith.mulf %0, %82 : vector<8x128xf32>
    %c7_18 = arith.constant 7 : index
    %84 = memref.load %arg2[%c7_18] : memref<8xf32, #tpu.memory_space<smem>>
    %85 = vector.broadcast %84 : f32 to vector<8x128xf32>
    %86 = arith.addf %83, %85 : vector<8x128xf32>
    %87 = math.tanh %86 : vector<8x128xf32>
    %88 = vector.broadcast %80 : f32 to vector<8x128xf32>
    %89 = arith.mulf %88, %87 : vector<8x128xf32>
    %90 = arith.addf %79, %89 : vector<8x128xf32>
    %c0_19 = arith.constant 0 : index
    %c0_20 = arith.constant 0 : index
    %91 = vector.load %arg6[%c0_19, %c0_20] : memref<8x128xf32, #tpu.memory_space<vmem>>, vector<8x128xf32>
    tpu.vector_store %arg6[%c0_19, %c0_20], %90 {strides = array<i32>} : memref<8x128xf32, #tpu.memory_space<vmem>>, vector<8x128xf32>,
    return
  }
  func.func @transform_0(%arg0: i32, %arg1: memref<8xf32, #tpu.memory_space<smem>>, %arg2: memref<8xf32, #tpu.memory_space<smem>>, %arg3: memref<8xf32, #tpu.memory_space<smem>>, %arg4: memref<1xf32, #tpu.memory_space<smem>>) -> (i32, i32) {
    %c0_i32 = arith.constant 0 : i32
    %c0_i32_0 = arith.constant 0 : i32
    return %arg0, %c0_i32 : i32, i32
  }
  func.func @transform_1(%arg0: i32, %arg1: memref<8xf32, #tpu.memory_space<smem>>, %arg2: memref<8xf32, #tpu.memory_space<smem>>, %arg3: memref<8xf32, #tpu.memory_space<smem>>, %arg4: memref<1xf32, #tpu.memory_space<smem>>) -> (i32, i32) {
    %c0_i32 = arith.constant 0 : i32
    %c0_i32_0 = arith.constant 0 : i32
    return %arg0, %c0_i32 : i32, i32
  }
}

</mosaic_0001>

<llo_original>
// kernel: tpu_custom_call.1
$region0: #{tpu_custom_call.1}
  #allocation0 [shape = 'u32[]', space=smem, size = 0x4, offset = 0x4, fixed_abs, tag = 'smem constant byte address 0x4 - core index']
  #allocation1 [shape = 'u32[144,128]{1,0:T(1,128)}', space=vmem, size = 0x12000, scoped, tag = 'internal scratch']
  #allocation2 [shape = 's32[1]{0}', space=sflag, size = 0x4, scoped, tag = 'scoped memory for tpu_custom_call.1']
  #allocation3 [shape = 'u8[512]{0}', space=smem, size = 0x200, scoped, tag = 'prefetched SMEM operand 0']
  #allocation4 [shape = 'u8[512]{0}', space=smem, size = 0x200, scoped, tag = 'prefetched SMEM operand 1']
  #allocation5 [shape = 'u8[512]{0}', space=smem, size = 0x200, scoped, tag = 'prefetched SMEM operand 2']
  #allocation6 [shape = 'f32[1]{0:T(128)S(6)}', space=smem, size = 0x200, scoped, tag = 'prefetched SMEM operand 3']
  %s0 = inlined_call_operand.vmem [shape: f32[8], index: 0, kind: input, shape index: {}]
  %s1 = inlined_call_operand.vmem [shape: f32[8], index: 1, kind: input, shape index: {}]
  %s2 = inlined_call_operand.vmem [shape: f32[8], index: 2, kind: input, shape index: {}]
  %s3 = inlined_call_operand.<no memory space> [shape: f32[1], index: 3, kind: input, shape index: {}]
  %s4 = inlined_call_operand.hbm [shape: f32[24,128], index: 4, kind: input, shape index: {}]
  %s5 = inlined_call_operand.hbm [shape: f32[24,128], index: 5, kind: output, shape index: {}]
  %s6 = sld [smem:[#allocation0]]
  $region41: #{tpu_custom_call.1} parent=0
    _
  %s8 = ssub.s32 1, %s6
  %s9 = scalar_select 0, %s8, %s6
  %s10 = sshll.u32 %s0, 4
  %s11 = int_to_ptr.vmem [resolvable:$true] %s10
  %13 = dma.vmem_to_smem %s11, 16, [#allocation3], [#allocation2]
  %s14 = sshll.u32 %s1, 4
  %s15 = int_to_ptr.vmem [resolvable:$true] %s14
  %17 = dma.vmem_to_smem %s15, 16, [#allocation4], [#allocation2]
  %s18 = sshll.u32 %s2, 4
  %s19 = int_to_ptr.vmem [resolvable:$true] %s18
  %21 = dma.vmem_to_smem %s19, 16, [#allocation5], [#allocation2]
  %22 = sst [smem:[#allocation6]] %s3
  %23 = dma.done [#allocation2], 48
  %24 = sfence
  $region1: #{tpu_custom_call.1} parent=0
    #allocation7 [shape = 'u8[8192]{0}', space=vmem, size = 0x2000, scoped, tag = 'input window, operand 4']
    #allocation8 [shape = 's32[2]{0}', space=sflag, size = 0x8, scoped, tag = 'scoped memory for tpu_custom_call.1']
    #allocation9 [shape = 's32[2]{0}', space=sflag, size = 0x8, scoped, tag = 'scoped memory for tpu_custom_call.1']
    #allocation10 [shape = 'u8[8192]{0}', space=vmem, size = 0x2000, scoped, tag = 'output window, operand 0']
    %25 = vsyncpa [#allocation8], 0
    %s26 = scalar_lea.sflag [#allocation8], 1
    %27 = vsyncpa %s26, 0
    %28 = vsyncpa [#allocation9], 0
    %s29 = scalar_lea.sflag [#allocation9], 1
    %30 = vsyncpa %s29, 0
    loop: start=0, step=1, limit=5
    $region2: #{tpu_custom_call.1} parent=1 // loop_pre_header
      _
    $region3: #{tpu_custom_call.1} parent=1 // loop_header
      %s32 = sphi 0, %s36
      %p33 = scmp.ge.s32.totalorder %s32, 5
      %s42 = sphi 0, %s44
      %s45 = sphi 0, %s42
      %s46 = sphi 0, %s45
      %s62 = sphi 0, %s46
      %s68 = sphi 0, %s70
      %s71 = sphi 0, %s68
      %s72 = sphi 0, %s71
      %s88 = sphi 0, %s72
    $region4: #{tpu_custom_call.1} parent=1 // loop_header_branch
      %35 = sbr.rel (%p33) target = $region8
    $region5: #{tpu_custom_call.1} parent=1 // loop_body
      %s37 = ssub.s32 %s32, 1
      %s38 = ssub.s32 %s32, 2
      %s39 = sadd.s32 %s32, 1
      %s40 = ssub.s32 %s32, %s39
      %p41 = scmp.eq.s32.totalorder %s40, 0
      %s43 = sadd.s32 %s42, 1
      %s44 = scalar_select %p41, %s42, %s43
      %p47 = pneg %p41
      %p48 = scmp.eq.s32.totalorder %s32, 2
      %p49 = por %p47, %p48
      %p50 = scmp.ne.s32.totalorder %s42, %s45
      %p51 = scmp.eq.s32.totalorder %s32, 0
      %p52 = por %p50, %p51
      %p53 = scmp.ne.s32.totalorder %s42, %s45
      %p54 = scmp.eq.s32.totalorder %s37, 2
      %p55 = por %p53, %p54
      %p56 = scmp.ne.s32.totalorder %s45, %s46
      %p57 = scmp.eq.s32.totalorder %s37, 0
      %p58 = por %p56, %p57
      %p59 = scmp.ne.s32.totalorder %s45, %s46
      %p60 = scmp.eq.s32.totalorder %s38, 2
      %p61 = por %p59, %p60
      %p63 = scmp.ne.s32.totalorder %s46, %s62
      %p64 = scmp.eq.s32.totalorder %s38, 0
      %p65 = por %p63, %p64
      %s66 = ssub.s32 %s32, %s39
      %p67 = scmp.eq.s32.totalorder %s66, 0
      %s69 = sadd.s32 %s68, 1
      %s70 = scalar_select %p67, %s68, %s69
      %p73 = pneg %p67
      %p74 = scmp.eq.s32.totalorder %s32, 2
      %p75 = por %p73, %p74
      %p76 = scmp.ne.s32.totalorder %s68, %s71
      %p77 = scmp.eq.s32.totalorder %s32, 0
      %p78 = por %p76, %p77
      %p79 = scmp.ne.s32.totalorder %s68, %s71
      %p80 = scmp.eq.s32.totalorder %s37, 2
      %p81 = por %p79, %p80
      %p82 = scmp.ne.s32.totalorder %s71, %s72
      %p83 = scmp.eq.s32.totalorder %s37, 0
      %p84 = por %p82, %p83
      %p85 = scmp.ne.s32.totalorder %s71, %s72
      %p86 = scmp.eq.s32.totalorder %s38, 2
      %p87 = por %p85, %p86
      %p89 = scmp.ne.s32.totalorder %s72, %s88
      %p90 = scmp.eq.s32.totalorder %s38, 0
      %p91 = por %p89, %p90
      %p92 = scmp.le.s32.totalorder 1, %s32
      %p93 = scmp.lt.s32.totalorder %s32, 4
      %p94 = pnand %p92, %p93
      %p95 = pneg %p94
      // Predicated region
      $region9: #{tpu_custom_call.1} parent=5 // pred_check
        _
      $region10: #{tpu_custom_call.1} parent=5 // pred_check_branch
        %97 = sbr.rel (%p94) target = $region12
      $region11: #{tpu_custom_call.1} parent=5 // pred_region
        %s98 = ssub.s32 %s32, 1
      $region12: #{tpu_custom_call.1} parent=5 // pred_fallthru
        _
      %p99 = scmp.lt.s32.totalorder %s32, 3
      // Predicated region
      $region13: #{tpu_custom_call.1} parent=5 // pred_check
        %p100 = pneg %p99
      $region14: #{tpu_custom_call.1} parent=5 // pred_check_branch
        %102 = sbr.rel (%p100) target = $region16
      $region15: #{tpu_custom_call.1} parent=5 // pred_region
        // Predicated region
        $region17: #{tpu_custom_call.1} parent=15 // pred_check
          %p103 = pneg %p52
        $region18: #{tpu_custom_call.1} parent=15 // pred_check_branch
          %105 = sbr.rel (%p103) target = $region20
        $region19: #{tpu_custom_call.1} parent=15 // pred_region
          %s106 = sand.u32 %s42, 1
          %s107 = scalar_lea.sflag [#allocation8], %s106
          %s108 = sand.u32 %s42, 1
          %s109 = smul.addr %s108, 8
          %s110 = scalar_lea.vmem [#allocation7], %s109
          %s112 = ssub.s32 128, 128
          %113 = vsyncadd %s107, %s112
          %s114 = smul.addr %s32, 128
          %s115 = scalar_lea.hbm %s4, %s114
          %s117 = sshll.u32 %s110, 4
          %s118 = int_to_ptr.vmem [resolvable:$true] %s117
          %120 = dma.hbm_to_vmem [thread:$0]  %s115, 128, %s118, %s107
        $region20: #{tpu_custom_call.1} parent=15 // pred_fallthru
          _
      $region16: #{tpu_custom_call.1} parent=5 // pred_fallthru
        _
      %p121 = scmp.le.s32.totalorder 1, %s32
      %p122 = scmp.lt.s32.totalorder %s32, 4
      %p123 = pnand %p121, %p122
      %p124 = pneg %p123
      // Predicated region
      $region21: #{tpu_custom_call.1} parent=5 // pred_check
        _
      $region22: #{tpu_custom_call.1} parent=5 // pred_check_branch
        %126 = sbr.rel (%p123) target = $region24
      $region23: #{tpu_custom_call.1} parent=5 // pred_region
        %s127 = ssub.s32 %s32, 1
        %s128 = sand.u32 %s45, 1
        %s129 = scalar_lea.sflag [#allocation8], %s128
        %s130 = sand.u32 %s45, 1
        %s131 = smul.addr %s130, 8
        %s132 = scalar_lea.vmem [#allocation7], %s131
        // Predicated region
        $region25: #{tpu_custom_call.1} parent=23 // pred_check
          %p133 = pneg %p58
        $region26: #{tpu_custom_call.1} parent=23 // pred_check_branch
          %135 = sbr.rel (%p133) target = $region28
        $region27: #{tpu_custom_call.1} parent=23 // pred_region
          %136 = dma.done %s129, 128
        $region28: #{tpu_custom_call.1} parent=23 // pred_fallthru
          _
        %s137 = sand.u32 %s45, 1
        %s138 = scalar_lea.sflag [#allocation8], %s137
        %s139 = sand.u32 %s45, 1
        %s140 = smul.addr %s139, 8
        %s141 = scalar_lea.vmem [#allocation7], %s140
        %p142 = pneg %p58
        %p143 = pneg %p55
        %p144 = pneg %p84
        %p145 = pneg %p81
        %s146 = sand.u32 %s71, 1
        %s147 = scalar_lea.sflag [#allocation9], %s146
        %s148 = sand.u32 %s71, 1
        %s149 = smul.addr %s148, 8
        %s150 = scalar_lea.vmem [#allocation10], %s149
        %v151 = vld [vmem:[%s132] sm:$0xff]
        %s152 = sld [smem:[#allocation6]]
        %v153 = vstv %s152
        %s154 = sld [smem:[#allocation5]]
        %s155 = sld [smem:[#allocation3]]
        %v156 = vstv %s155
        %v157 = vmul.f32 %v151, %v156
        %s158 = sld [smem:[#allocation4]]
        %v159 = vstv %s158
        %v160 = vadd.f32 %v157, %v159
        %v161 = vtanh.pop %v160
        %v162 = vstv %s154
        %v163 = vmul.f32 %v162, %v161
        %v164 = vadd.f32 %v153, %v163
        %s165 = sld [smem:[#allocation5 + $0x1]]
        %s166 = sld [smem:[#allocation3 + $0x1]]
        %v167 = vstv %s166
        %v168 = vmul.f32 %v151, %v167
        %s169 = sld [smem:[#allocation4 + $0x1]]
        %v170 = vstv %s169
        %v171 = vadd.f32 %v168, %v170
        %v172 = vtanh.pop %v171
        %v173 = vstv %s165
        %v174 = vmul.f32 %v173, %v172
        %v175 = vadd.f32 %v164, %v174
        %s176 = sld [smem:[#allocation5 + $0x2]]
        %s177 = sld [smem:[#allocation3 + $0x2]]
        %v178 = vstv %s177
        %v179 = vmul.f32 %v151, %v178
        %s180 = sld [smem:[#allocation4 + $0x2]]
        %v181 = vstv %s180
        %v182 = vadd.f32 %v179, %v181
        %v183 = vtanh.pop %v182
        %v184 = vstv %s176
        %v185 = vmul.f32 %v184, %v183
        %v186 = vadd.f32 %v175, %v185
        %s187 = sld [smem:[#allocation5 + $0x3]]
        %s188 = sld [smem:[#allocation3 + $0x3]]
        %v189 = vstv %s188
        %v190 = vmul.f32 %v151, %v189
        %s191 = sld [smem:[#allocation4 + $0x3]]
        %v192 = vstv %s191
        %v193 = vadd.f32 %v190, %v192
        %v194 = vtanh.pop %v193
        %v195 = vstv %s187
        %v196 = vmul.f32 %v195, %v194
        %v197 = vadd.f32 %v186, %v196
        %s198 = sld [smem:[#allocation5 + $0x4]]
        %s199 = sld [smem:[#allocation3 + $0x4]]
        %v200 = vstv %s199
        %v201 = vmul.f32 %v151, %v200
        %s202 = sld [smem:[#allocation4 + $0x4]]
        %v203 = vstv %s202
        %v204 = vadd.f32 %v201, %v203
        %v205 = vtanh.pop %v204
        %v206 = vstv %s198
        %v207 = vmul.f32 %v206, %v205
        %v208 = vadd.f32 %v197, %v207
        %s209 = sld [smem:[#allocation5 + $0x5]]
        %s210 = sld [smem:[#allocation3 + $0x5]]
        %v211 = vstv %s210
        %v212 = vmul.f32 %v151, %v211
        %s213 = sld [smem:[#allocation4 + $0x5]]
        %v214 = vstv %s213
        %v215 = vadd.f32 %v212, %v214
        %v216 = vtanh.pop %v215
        %v217 = vstv %s209
        %v218 = vmul.f32 %v217, %v216
        %v219 = vadd.f32 %v208, %v218
        %s220 = sld [smem:[#allocation5 + $0x6]]
        %s221 = sld [smem:[#allocation3 + $0x6]]
        %v222 = vstv %s221
        %v223 = vmul.f32 %v151, %v222
        %s224 = sld [smem:[#allocation4 + $0x6]]
        %v225 = vstv %s224
        %v226 = vadd.f32 %v223, %v225
        %v227 = vtanh.pop %v226
        %v228 = vstv %s220
        %v229 = vmul.f32 %v228, %v227
        %v230 = vadd.f32 %v219, %v229
        %s231 = sld [smem:[#allocation5 + $0x7]]
        %s232 = sld [smem:[#allocation3 + $0x7]]
        %v233 = vstv %s232
        %v234 = vmul.f32 %v151, %v233
        %s235 = sld [smem:[#allocation4 + $0x7]]
        %v236 = vstv %s235
        %v237 = vadd.f32 %v234, %v236
        %v238 = vtanh.pop %v237
        %v239 = vstv %s231
        %v240 = vmul.f32 %v239, %v238
        %v241 = vadd.f32 %v230, %v240
        %242 = vst [vmem:[%s150] sm:$0xff] %v241
        %s243 = sand.u32 %s71, 1
        %s244 = scalar_lea.sflag [#allocation9], %s243
        %s245 = sand.u32 %s71, 1
        %s246 = smul.addr %s245, 8
        %s247 = scalar_lea.vmem [#allocation10], %s246
        // Predicated region
        $region29: #{tpu_custom_call.1} parent=23 // pred_check
          %p248 = pneg %p81
        $region30: #{tpu_custom_call.1} parent=23 // pred_check_branch
          %250 = sbr.rel (%p248) target = $region32
        $region31: #{tpu_custom_call.1} parent=23 // pred_region
          %s252 = ssub.s32 128, 128
          %253 = vsyncadd %s244, %s252
          %s254 = smul.addr %s37, 128
          %s255 = scalar_lea.hbm %s5, %s254
          %s257 = sshll.u32 %s247, 4
          %s258 = int_to_ptr.vmem [resolvable:$true] %s257
          %260 = dma.vmem_to_hbm [thread:$0]  %s258, 128, %s255, %s244
        $region32: #{tpu_custom_call.1} parent=23 // pred_fallthru
          _
      $region24: #{tpu_custom_call.1} parent=5 // pred_fallthru
        _
      %p261 = scmp.le.s32.totalorder 2, %s32
      // Predicated region
      $region33: #{tpu_custom_call.1} parent=5 // pred_check
        %p262 = pneg %p261
      $region34: #{tpu_custom_call.1} parent=5 // pred_check_branch
        %264 = sbr.rel (%p262) target = $region36
      $region35: #{tpu_custom_call.1} parent=5 // pred_region
        %s265 = ssub.s32 %s32, 2
        // Predicated region
        $region37: #{tpu_custom_call.1} parent=35 // pred_check
          %p266 = pneg %p87
        $region38: #{tpu_custom_call.1} parent=35 // pred_check_branch
          %268 = sbr.rel (%p266) target = $region40
        $region39: #{tpu_custom_call.1} parent=35 // pred_region
          %s269 = sand.u32 %s72, 1
          %s270 = scalar_lea.sflag [#allocation9], %s269
          %s271 = sand.u32 %s72, 1
          %s272 = smul.addr %s271, 8
          %s273 = scalar_lea.vmem [#allocation10], %s272
          %274 = dma.done %s270, 128
        $region40: #{tpu_custom_call.1} parent=35 // pred_fallthru
          _
      $region36: #{tpu_custom_call.1} parent=5 // pred_fallthru
        _
    $region6: #{tpu_custom_call.1} parent=1 // loop_footer
      %s36 = sadd.s32 1, %s32
    $region7: #{tpu_custom_call.1} parent=1 // loop_footer_branch
      %31 = sbr.rel target = $region3
    $region8: #{tpu_custom_call.1} parent=1 // loop_exit
      _
    %275 = vsyncpa [#allocation8], 1
    %s276 = scalar_lea.sflag [#allocation8], 1
    %277 = vsyncpa %s276, 1
    %278 = vsyncpa [#allocation9], 1
    %s279 = scalar_lea.sflag [#allocation9], 1
    %280 = vsyncpa %s279, 1

</llo_original>
